<compile_context>
chip_gen: v7x
topology: tpu7x:2x2x1
jax: 0.10.0
libtpu: 0.0.40
codegen_flags: <defaults>
</compile_context>

<pallas_src>
import functools

import jax
import jax.numpy as jnp
from jax.experimental import pallas as pl
from jax.experimental.pallas import tpu as pltpu

LN_EPS = 1e-5  # torch.nn.LayerNorm default


def _round_up(x, m):
    return (x + m - 1) // m * m


# ---------------------------------------------------------------------------
# Generation-aware tiling
# ---------------------------------------------------------------------------

_TILE_CONFIG = {
    # generation: (tm_max, tn_max, vmem_limit_bytes, min_row_tiles)
    "v6e": (2048, 4096, 100 * 1024 * 1024, 1),
    "v5e": (512, 2048, 100 * 1024 * 1024, 1),
    "v7x": (512, 4096, 48 * 1024 * 1024, 2),   # 64 MiB physical VMEM, 2 TCs
    "unknown": (512, 2048, 48 * 1024 * 1024, 2),
}


def _tpu_generation():
    try:
        kind = jax.devices()[0].device_kind.lower()
    except Exception:
        return "unknown"
    if "v6" in kind:
        return "v6e"
    if "v5e" in kind or "v5 lite" in kind or "v5lite" in kind:
        return "v5e"
    if "7" in kind:
        return "v7x"
    return "unknown"


def choose_tiling(rows, hidden_size, vocab_size):
    """Host-side (static-shape) tile selection."""
    gen = _tpu_generation()
    tm_max, tn_max, vmem_limit, min_row_tiles = _TILE_CONFIG.get(
        gen, _TILE_CONFIG["unknown"])

    # Row tile: as large as the generation allows, multiple of 16 (bf16
    # sublane packing), never hugely larger than the actual row count.
    tm = min(tm_max, _round_up(rows, 16))
    # On multi-TC chips (v7x) keep >= 2 row tiles so both cores get work.
    if min_row_tiles > 1 and rows >= min_row_tiles * 256:
        tm = min(tm, _round_up(-(-rows // min_row_tiles), 256))

    # Vocab tile: lane-dense multiple of 128.
    tn = min(tn_max, _round_up(vocab_size, 128))

    def vmem_estimate(tm_, tn_):
        h = hidden_size
        blocks = (tm_ * h * 4              # x tile (f32 in, cast in-kernel)
                  + h * h * 2              # W1 (bf16, resident)
                  + h * tn_ * 2            # W2 vocab tile (bf16)
                  + (3 * h + tn_) * 4      # b1 / gamma / beta / b2 tiles
                  + tm_ * tn_ * 2)         # logits tile (bf16)
        return 2 * blocks + tm_ * h * 2    # double-buffered + bf16 act scratch

    # Shrink tiles until they fit comfortably inside the VMEM budget.
    while (vmem_estimate(tm, tn) > int(0.85 * vmem_limit)
           and (tn > 1024 or tm > 512)):
        if tn > 1024:
            tn = _round_up(tn // 2, 128)
        else:
            tm = _round_up(tm // 2, 16)

    return dict(tm=tm, tn=tn, vmem_limit_bytes=vmem_limit, generation=gen)


# ---------------------------------------------------------------------------
# One-time parameter preparation (OUTSIDE the per-call hot path)
# ---------------------------------------------------------------------------

def prepare_params(params, v_pad):
    """Cast MXU operands to bf16 and pad the vocab dim once, ahead of time."""
    hidden = params["w1"].shape[0]
    vocab = params["w2"].shape[1]
    w2 = params["w2"].astype(jnp.bfloat16)
    b2 = params["b2"].astype(jnp.float32).reshape(1, vocab)
    if v_pad != vocab:
        w2 = jnp.pad(w2, ((0, 0), (0, v_pad - vocab)))
        b2 = jnp.pad(b2, ((0, 0), (0, v_pad - vocab)))
    return {
        "w1": params["w1"].astype(jnp.bfloat16),
        "b1": params["b1"].astype(jnp.float32).reshape(1, hidden),
        "gamma": params["gamma"].astype(jnp.float32).reshape(1, hidden),
        "beta": params["beta"].astype(jnp.float32).reshape(1, hidden),
        "w2": w2,
        "b2": b2,
    }


# ---------------------------------------------------------------------------
# Kernel
# ---------------------------------------------------------------------------

def _mlm_head_kernel(x_ref, w1_ref, b1_ref, g_ref, beta_ref, w2_ref, b2_ref,
                     o_ref, a_ref):
    """Grid = (row_tiles, vocab_tiles); vocab axis is innermost ("arbitrary").

    On the first vocab step of each row tile, compute
      a = ReLU(LayerNorm(x @ W1 + b1))
    once and stash it (bf16) in VMEM scratch; every vocab step then only does
      logits_tile = a @ W2_tile + b2_tile.
    """

    @pl.when(pl.program_id(1) == 0)
    def _compute_dense_block():
        # x arrives f32; cast to bf16 for the MXU (VPU filler, hidden).
        xb = x_ref[...].astype(jnp.bfloat16)
        h = jnp.dot(xb, w1_ref[...], preferred_element_type=jnp.float32)
        h = h + b1_ref[...]                                   # (TM, H) f32

        # LayerNorm over the feature axis (two-pass variance, f32 stats).
        mu = jnp.mean(h, axis=-1, keepdims=True)
        d = h - mu
        var = jnp.mean(d * d, axis=-1, keepdims=True)
        hn = d * jax.lax.rsqrt(var + LN_EPS)
        hn = hn * g_ref[...] + beta_ref[...]

        # ReLU (Dropout is identity at inference); cache bf16 MXU operand.
        a_ref[...] = jnp.maximum(hn, 0.0).astype(a_ref.dtype)

    # Output projection for this vocab tile.
    logits = jnp.dot(a_ref[...], w2_ref[...],
                     preferred_element_type=jnp.float32)
    o_ref[...] = (logits + b2_ref[...]).astype(o_ref.dtype)


@functools.partial(
    jax.jit,
    static_argnames=("tm", "tn", "vmem_limit_bytes", "vocab_size", "out_dtype"))
def mlm_head_forward(last_hidden_state, prep, *, tm, tn, vmem_limit_bytes,
                     vocab_size, out_dtype=jnp.bfloat16):
    """last_hidden_state: [B, S, H] -> logits: [B, S, V] (out_dtype)."""
    B, S, H = last_hidden_state.shape
    v_p = prep["w2"].shape[1]
    assert v_p % tn == 0, "prepare_params must pad V to a multiple of tn"

    rows = B * S
    rows_p = _round_up(rows, tm)

    x2d = last_hidden_state.reshape(rows, H)          # stays f32
    if rows_p != rows:
        x2d = jnp.pad(x2d, ((0, rows_p - rows), (0, 0)))

    grid = (rows_p // tm, v_p // tn)

    out_itemsize = jnp.dtype(out_dtype).itemsize
    cost = pl.CostEstimate(
        flops=2 * rows_p * H * (H + v_p),
        transcendentals=rows_p,                       # one rsqrt per row
        bytes_accessed=(rows_p * H * 4                # x (f32)
                        + H * H * 2                   # W1 (bf16, resident)
                        + grid[0] * H * v_p * 2       # W2 streamed per row tile
                        + rows_p * v_p * out_itemsize),
    )

    logits = pl.pallas_call(
        _mlm_head_kernel,
        out_shape=jax.ShapeDtypeStruct((rows_p, v_p), out_dtype),
        grid_spec=pltpu.PrefetchScalarGridSpec(
            num_scalar_prefetch=0,
            grid=grid,
            in_specs=[
                pl.BlockSpec((tm, H), lambda i, j: (i, 0)),   # x row tile (f32)
                pl.BlockSpec((H, H), lambda i, j: (0, 0)),    # W1 (resident)
                pl.BlockSpec((1, H), lambda i, j: (0, 0)),    # b1
                pl.BlockSpec((1, H), lambda i, j: (0, 0)),    # LN gamma
                pl.BlockSpec((1, H), lambda i, j: (0, 0)),    # LN beta
                pl.BlockSpec((H, tn), lambda i, j: (0, j)),   # W2 vocab tile
                pl.BlockSpec((1, tn), lambda i, j: (0, j)),   # b2 vocab tile
            ],
            out_specs=pl.BlockSpec((tm, tn), lambda i, j: (i, j)),
            scratch_shapes=[pltpu.VMEM((tm, H), jnp.bfloat16)],  # cached 'a'
        ),
        compiler_params=pltpu.CompilerParams(
            dimension_semantics=("parallel", "arbitrary"),
            vmem_limit_bytes=vmem_limit_bytes,
        ),
        cost_estimate=cost,
    )(x2d, prep["w1"], prep["b1"], prep["gamma"], prep["beta"],
      prep["w2"], prep["b2"])

    return logits[:rows, :vocab_size].reshape(B, S, vocab_size)


# ---------------------------------------------------------------------------
# Parameters & reference
# ---------------------------------------------------------------------------

def init_params(key, hidden_size, vocab_size):
    """Deterministic synthetic parameters matching the torch module shapes.

    torch nn.Linear stores weight as (out, in); we store the transposed
    (in, out) layout so the kernel can do x @ W directly.
    """
    k1, k2, k3, k4 = jax.random.split(key, 4)
    s1 = 1.0 / jnp.sqrt(hidden_size)
    return {
        "w1": jax.random.uniform(k1, (hidden_size, hidden_size),
                                 jnp.float32, -s1, s1),
        "b1": jax.random.uniform(k2, (hidden_size,), jnp.float32, -s1, s1),
        "gamma": jnp.ones((hidden_size,), jnp.float32),
        "beta": jnp.zeros((hidden_size,), jnp.float32),
        "w2": jax.random.uniform(k3, (hidden_size, vocab_size),
                                 jnp.float32, -s1, s1),
        "b2": jax.random.uniform(k4, (vocab_size,), jnp.float32, -s1, s1),
    }


def _reference_forward(x, params):
    """Pure-JAX reference mirroring the kernel's precision policy
    (bf16 MXU operands, f32 accumulation / LayerNorm)."""
    xb = x.astype(jnp.bfloat16)
    w1 = params["w1"].astype(jnp.bfloat16)
    h = jnp.dot(xb, w1, preferred_element_type=jnp.float32) + params["b1"]
    mu = h.mean(-1, keepdims=True)
    var = ((h - mu) ** 2).mean(-1, keepdims=True)
    hn = (h - mu) / jnp.sqrt(var + LN_EPS)
    hn = hn * params["gamma"] + params["beta"]
    a = jnp.maximum(hn, 0.0).astype(jnp.bfloat16)
    w2 = params["w2"].astype(jnp.bfloat16)
    return jnp.dot(a, w2, preferred_element_type=jnp.float32) + params["b2"]


if __name__ == "__main__":
    # Small shapes: batch=2, seq=8, backbone_hidden_size=32, vocab_size=256
    B, S, H, V = 2, 8, 32, 256
    key = jax.random.PRNGKey(0)
    kx, kp = jax.random.split(key)

    last_hidden_state = jax.random.normal(kx, (B, S, H), jnp.float32)
    params = init_params(kp, H, V)

    # Tile selection (static, generation-aware) and one-time weight prep —
    # both deliberately OUTSIDE the per-call jitted forward.
    cfg = choose_tiling(B * S, H, V)
    v_pad = _round_up(V, cfg["tn"])
    prep = prepare_params(params, v_pad)
    prep = jax.block_until_ready(prep)

    # labels=None path of MLMHead.forward -> loss is None, only logits computed.
    # TODO(synk): CrossEntropyLoss branch (labels provided) not implemented in-kernel.
    logits = mlm_head_forward(last_hidden_state, prep,
                              tm=cfg["tm"], tn=cfg["tn"],
                              vmem_limit_bytes=cfg["vmem_limit_bytes"],
                              vocab_size=V)
    logits = jax.block_until_ready(logits)

    ref = _reference_forward(last_hidden_state, params)
    assert logits.shape == (B, S, V)
    # bf16 logits vs f32-accumulated reference: tolerance covers the final
    # bf16 rounding plus accumulation-order differences.
    assert jnp.allclose(logits.astype(jnp.float32), ref, atol=2e-2, rtol=2e-2)

    print("KERNEL_OK")
</pallas_src>

<mosaic_0001>
module attributes {stable_mosaic.version = 11 : i64} {
  func.func @_mlm_head_kernel(%arg0: i32, %arg1: i32, %arg2: memref<16x32xf32, #tpu.memory_space<vmem>>, %arg3: memref<32x32xbf16, #tpu.memory_space<vmem>>, %arg4: memref<1x32xf32, #tpu.memory_space<vmem>>, %arg5: memref<1x32xf32, #tpu.memory_space<vmem>>, %arg6: memref<1x32xf32, #tpu.memory_space<vmem>>, %arg7: memref<32x256xbf16, #tpu.memory_space<vmem>>, %arg8: memref<1x256xf32, #tpu.memory_space<vmem>>, %arg9: memref<16x256xbf16, #tpu.memory_space<vmem>>, %arg10: memref<16x32xbf16, #tpu.memory_space<vmem>>) attributes {dimension_semantics = [#tpu.dimension_semantics<parallel>, #tpu.dimension_semantics<arbitrary>], iteration_bounds = array<i64: 1, 1>, scalar_prefetch = 0 : i64, scratch_operands = 1 : i64, tpu.core_type = #tpu.core_type<tc>, window_params = [{transform_indices = @transform_0, window_bounds = array<i64: 16, 32>}, {pipeline_mode = #tpu.pipeline_mode<synchronous>, transform_indices = @transform_1, window_bounds = array<i64: 32, 32>}, {pipeline_mode = #tpu.pipeline_mode<synchronous>, transform_indices = @transform_2, window_bounds = array<i64: 1, 32>}, {pipeline_mode = #tpu.pipeline_mode<synchronous>, transform_indices = @transform_3, window_bounds = array<i64: 1, 32>}, {pipeline_mode = #tpu.pipeline_mode<synchronous>, transform_indices = @transform_4, window_bounds = array<i64: 1, 32>}, {transform_indices = @transform_5, window_bounds = array<i64: 32, 256>}, {transform_indices = @transform_6, window_bounds = array<i64: 1, 256>}, {transform_indices = @transform_7, window_bounds = array<i64: 16, 256>}]} {
    %c0_i32 = arith.constant 0 : i32
    %0 = arith.cmpi eq, %arg1, %c0_i32 : i32
    %1 = arith.extui %0 : i1 to i32
    %c0_i32_0 = arith.constant 0 : i32
    %2 = arith.cmpi ne, %1, %c0_i32_0 : i32
    scf.if %2 {
      %c0_8 = arith.constant 0 : index
      %c0_9 = arith.constant 0 : index
      %11 = vector.load %arg2[%c0_8, %c0_9] : memref<16x32xf32, #tpu.memory_space<vmem>>, vector<16x32xf32>
      %12 = arith.truncf %11 : vector<16x32xf32> to vector<16x32xbf16>
      %c0_10 = arith.constant 0 : index
      %c0_11 = arith.constant 0 : index
      %13 = vector.load %arg3[%c0_10, %c0_11] : memref<32x32xbf16, #tpu.memory_space<vmem>>, vector<32x32xbf16>
      %cst_12 = arith.constant dense<0.000000e+00> : vector<16x32xf32>
      %14 = tpu.matmul %12, %13, %cst_12 {dimension_numbers = #tpu.dot_dimension_numbers<[1], [0], [0], [1], [0, 0, 1, 1], [], []>} : vector<16x32xbf16>, vector<32x32xbf16>, vector<16x32xf32> -> vector<16x32xf32>
      %c0_13 = arith.constant 0 : index
      %c0_14 = arith.constant 0 : index
      %15 = vector.load %arg4[%c0_13, %c0_14] : memref<1x32xf32, #tpu.memory_space<vmem>>, vector<1x32xf32>
      %16 = vector.broadcast %15 : vector<1x32xf32> to vector<16x32xf32>
      %17 = arith.addf %14, %16 : vector<16x32xf32>
      %cst_15 = arith.constant dense<0.000000e+00> : vector<16xf32>
      %18 = vector.multi_reduction <add>, %17, %cst_15 [1] : vector<16x32xf32> to vector<16xf32>
      %19 = vector.shape_cast %18 : vector<16xf32> to vector<16x1xf32>
      %cst_16 = arith.constant 3.200000e+01 : f32
      %20 = vector.broadcast %cst_16 : f32 to vector<16x1xf32>
      %21 = arith.divf %19, %20 : vector<16x1xf32>
      %22 = vector.broadcast %21 : vector<16x1xf32> to vector<16x32xf32>
      %23 = arith.subf %17, %22 : vector<16x32xf32>
      %24 = arith.mulf %23, %23 : vector<16x32xf32>
      %cst_17 = arith.constant dense<0.000000e+00> : vector<16xf32>
      %25 = vector.multi_reduction <add>, %24, %cst_17 [1] : vector<16x32xf32> to vector<16xf32>
      %26 = vector.shape_cast %25 : vector<16xf32> to vector<16x1xf32>
      %cst_18 = arith.constant 3.200000e+01 : f32
      %27 = vector.broadcast %cst_18 : f32 to vector<16x1xf32>
      %28 = arith.divf %26, %27 : vector<16x1xf32>
      %cst_19 = arith.constant 9.99999974E-6 : f32
      %29 = vector.broadcast %cst_19 : f32 to vector<16x1xf32>
      %30 = arith.addf %28, %29 : vector<16x1xf32>
      %31 = math.rsqrt %30 : vector<16x1xf32>
      %32 = vector.broadcast %31 : vector<16x1xf32> to vector<16x32xf32>
      %33 = arith.mulf %23, %32 : vector<16x32xf32>
      %c0_20 = arith.constant 0 : index
      %c0_21 = arith.constant 0 : index
      %34 = vector.load %arg5[%c0_20, %c0_21] : memref<1x32xf32, #tpu.memory_space<vmem>>, vector<1x32xf32>
      %35 = vector.broadcast %34 : vector<1x32xf32> to vector<16x32xf32>
      %36 = arith.mulf %33, %35 : vector<16x32xf32>
      %c0_22 = arith.constant 0 : index
      %c0_23 = arith.constant 0 : index
      %37 = vector.load %arg6[%c0_22, %c0_23] : memref<1x32xf32, #tpu.memory_space<vmem>>, vector<1x32xf32>
      %38 = vector.broadcast %37 : vector<1x32xf32> to vector<16x32xf32>
      %39 = arith.addf %36, %38 : vector<16x32xf32>
      %cst_24 = arith.constant 0.000000e+00 : f32
      %40 = vector.broadcast %cst_24 : f32 to vector<16x32xf32>
      %41 = arith.maximumf %39, %40 : vector<16x32xf32>
      %42 = arith.truncf %41 : vector<16x32xf32> to vector<16x32xbf16>
      %c0_25 = arith.constant 0 : index
      %c0_26 = arith.constant 0 : index
      %43 = vector.load %arg10[%c0_25, %c0_26] : memref<16x32xbf16, #tpu.memory_space<vmem>>, vector<16x32xbf16>
      tpu.vector_store %arg10[%c0_25, %c0_26], %42 {strides = array<i32>} : memref<16x32xbf16, #tpu.memory_space<vmem>>, vector<16x32xbf16>,
    } else {
    }
    %c0 = arith.constant 0 : index
    %c0_1 = arith.constant 0 : index
    %3 = vector.load %arg10[%c0, %c0_1] : memref<16x32xbf16, #tpu.memory_space<vmem>>, vector<16x32xbf16>
    %c0_2 = arith.constant 0 : index
    %c0_3 = arith.constant 0 : index
    %4 = vector.load %arg7[%c0_2, %c0_3] : memref<32x256xbf16, #tpu.memory_space<vmem>>, vector<32x256xbf16>
    %cst = arith.constant dense<0.000000e+00> : vector<16x256xf32>
    %5 = tpu.matmul %3, %4, %cst {dimension_numbers = #tpu.dot_dimension_numbers<[1], [0], [0], [1], [0, 0, 1, 1], [], []>} : vector<16x32xbf16>, vector<32x256xbf16>, vector<16x256xf32> -> vector<16x256xf32>
    %c0_4 = arith.constant 0 : index
    %c0_5 = arith.constant 0 : index
    %6 = vector.load %arg8[%c0_4, %c0_5] : memref<1x256xf32, #tpu.memory_space<vmem>>, vector<1x256xf32>
    %7 = vector.broadcast %6 : vector<1x256xf32> to vector<16x256xf32>
    %8 = arith.addf %5, %7 : vector<16x256xf32>
    %9 = arith.truncf %8 : vector<16x256xf32> to vector<16x256xbf16>
    %c0_6 = arith.constant 0 : index
    %c0_7 = arith.constant 0 : index
    %10 = vector.load %arg9[%c0_6, %c0_7] : memref<16x256xbf16, #tpu.memory_space<vmem>>, vector<16x256xbf16>
    tpu.vector_store %arg9[%c0_6, %c0_7], %9 {strides = array<i32>} : memref<16x256xbf16, #tpu.memory_space<vmem>>, vector<16x256xbf16>,
    return
  }
  func.func @transform_0(%arg0: i32, %arg1: i32) -> (i32, i32) {
    %c0_i32 = arith.constant 0 : i32
    %c0_i32_0 = arith.constant 0 : i32
    return %arg0, %c0_i32 : i32, i32
  }
  func.func @transform_1(%arg0: i32, %arg1: i32) -> (i32, i32) {
    %c0_i32 = arith.constant 0 : i32
    %c0_i32_0 = arith.constant 0 : i32
    %c0_i32_1 = arith.constant 0 : i32
    return %c0_i32, %c0_i32_0 : i32, i32
  }
  func.func @transform_2(%arg0: i32, %arg1: i32) -> (i32, i32) {
    %c0_i32 = arith.constant 0 : i32
    %c0_i32_0 = arith.constant 0 : i32
    %c0_i32_1 = arith.constant 0 : i32
    return %c0_i32, %c0_i32_0 : i32, i32
  }
  func.func @transform_3(%arg0: i32, %arg1: i32) -> (i32, i32) {
    %c0_i32 = arith.constant 0 : i32
    %c0_i32_0 = arith.constant 0 : i32
    %c0_i32_1 = arith.constant 0 : i32
    return %c0_i32, %c0_i32_0 : i32, i32
  }
  func.func @transform_4(%arg0: i32, %arg1: i32) -> (i32, i32) {
    %c0_i32 = arith.constant 0 : i32
    %c0_i32_0 = arith.constant 0 : i32
    %c0_i32_1 = arith.constant 0 : i32
    return %c0_i32, %c0_i32_0 : i32, i32
  }
  func.func @transform_5(%arg0: i32, %arg1: i32) -> (i32, i32) {
    %c0_i32 = arith.constant 0 : i32
    %c0_i32_0 = arith.constant 0 : i32
    return %c0_i32, %arg1 : i32, i32
  }
  func.func @transform_6(%arg0: i32, %arg1: i32) -> (i32, i32) {
    %c0_i32 = arith.constant 0 : i32
    %c0_i32_0 = arith.constant 0 : i32
    return %c0_i32, %arg1 : i32, i32
  }
  func.func @transform_7(%arg0: i32, %arg1: i32) -> (i32, i32) {
    %c0_i32 = arith.constant 0 : i32
    return %arg0, %arg1 : i32, i32
  }
}

</mosaic_0001>

<llo_original>
// kernel: mlm_head_forward.1
$region0: #{mlm_head_forward.1}
  #allocation0 [shape = 'u32[]', space=smem, size = 0x4, offset = 0x4, fixed_abs, tag = 'smem constant byte address 0x4 - core index']
  #allocation1 [shape = 'u32[144,128]{1,0:T(1,128)}', space=vmem, size = 0x12000, scoped, tag = 'internal scratch']
  #allocation2 [shape = 'bf16[16,32]{1,0:T(16,128)(2,1)}', space=vmem, size = 0x1000, scoped, tag = 'scratch operand']
  %s0 = inlined_call_operand.hbm [shape: f32[16,32], index: 0, kind: input, shape index: {}]
  %s1 = inlined_call_operand.vmem [shape: bf16[32,32], index: 1, kind: input, shape index: {}]
  %s2 = inlined_call_operand.vmem [shape: f32[1,32], index: 2, kind: input, shape index: {}]
  %s3 = inlined_call_operand.vmem [shape: f32[1,32], index: 3, kind: input, shape index: {}]
  %s4 = inlined_call_operand.vmem [shape: f32[1,32], index: 4, kind: input, shape index: {}]
  %s5 = inlined_call_operand.hbm [shape: bf16[32,256], index: 5, kind: input, shape index: {}]
  %s6 = inlined_call_operand.vmem [shape: f32[1,256], index: 6, kind: input, shape index: {}]
  %s7 = inlined_call_operand.hbm [shape: bf16[16,256], index: 7, kind: output, shape index: {}]
  %s8 = sld [smem:[#allocation0]]
  $region50: #{mlm_head_forward.1} parent=0
    _
  %s10 = ssub.s32 1, %s8
  %s11 = scalar_select 0, %s10, %s8
  $region1: #{mlm_head_forward.1} parent=0
    #allocation3 [shape = 'u8[8192]{0}', space=vmem, size = 0x2000, scoped, tag = 'input window, operand 0, single buffered']
    #allocation4 [shape = 's32[1]{0}', space=sflag, size = 0x4, scoped, tag = 'scoped memory for mlm_head_forward.1']
    #allocation5 [shape = 's32[1]{0}', space=sflag, size = 0x4, scoped, tag = 'scoped memory for mlm_head_forward.1']
    #allocation6 [shape = 'u8[16384]{0}', space=vmem, size = 0x4000, scoped, tag = 'input window, operand 5, single buffered']
    #allocation7 [shape = 's32[1]{0}', space=sflag, size = 0x4, scoped, tag = 'scoped memory for mlm_head_forward.1']
    #allocation8 [shape = 'u8[8192]{0}', space=vmem, size = 0x2000, scoped, tag = 'output window, operand 0, single buffered']
    %12 = vsyncpa [#allocation4], 0
    %13 = vsyncpa [#allocation7], 0
    %14 = vsyncpa [#allocation5], 0
    // Predicated region
    $region2: #{mlm_head_forward.1} parent=1 // pred_check
      _
    $region3: #{mlm_head_forward.1} parent=1 // pred_check_branch
      %16 = sbr.rel (0) target = $region5
    $region4: #{mlm_head_forward.1} parent=1 // pred_region
      %s18 = ssub.s32 256, 256
      %19 = vsyncadd [#allocation4], %s18
      %s20 = sshll.u32 [#allocation3], 4
      %s21 = int_to_ptr.vmem [resolvable:$true] %s20
      %26 = dma.hbm_to_vmem [thread:$0]  %s0, 256, %s21, [#allocation4], 128, 128, 8
    $region5: #{mlm_head_forward.1} parent=1 // pred_fallthru
      _
    // Predicated region
    $region6: #{mlm_head_forward.1} parent=1 // pred_check
      _
    $region7: #{mlm_head_forward.1} parent=1 // pred_check_branch
      %28 = sbr.rel (0) target = $region9
    $region8: #{mlm_head_forward.1} parent=1 // pred_region
      _
    $region9: #{mlm_head_forward.1} parent=1 // pred_fallthru
      _
    // Predicated region
    $region10: #{mlm_head_forward.1} parent=1 // pred_check
      _
    $region11: #{mlm_head_forward.1} parent=1 // pred_check_branch
      %30 = sbr.rel (0) target = $region13
    $region12: #{mlm_head_forward.1} parent=1 // pred_region
      _
    $region13: #{mlm_head_forward.1} parent=1 // pred_fallthru
      _
    // Predicated region
    $region14: #{mlm_head_forward.1} parent=1 // pred_check
      _
    $region15: #{mlm_head_forward.1} parent=1 // pred_check_branch
      %32 = sbr.rel (0) target = $region17
    $region16: #{mlm_head_forward.1} parent=1 // pred_region
      _
    $region17: #{mlm_head_forward.1} parent=1 // pred_fallthru
      _
    // Predicated region
    $region18: #{mlm_head_forward.1} parent=1 // pred_check
      _
    $region19: #{mlm_head_forward.1} parent=1 // pred_check_branch
      %34 = sbr.rel (0) target = $region21
    $region20: #{mlm_head_forward.1} parent=1 // pred_region
      _
    $region21: #{mlm_head_forward.1} parent=1 // pred_fallthru
      _
    // Predicated region
    $region22: #{mlm_head_forward.1} parent=1 // pred_check
      _
    $region23: #{mlm_head_forward.1} parent=1 // pred_check_branch
      %36 = sbr.rel (0) target = $region25
    $region24: #{mlm_head_forward.1} parent=1 // pred_region
      %s38 = ssub.s32 512, 512
      %39 = vsyncadd [#allocation7], %s38
      %s40 = sshll.u32 [#allocation6], 4
      %s41 = int_to_ptr.vmem [resolvable:$true] %s40
      %46 = dma.hbm_to_vmem [thread:$0]  %s5, 512, %s41, [#allocation7], 128, 128, 8
    $region25: #{mlm_head_forward.1} parent=1 // pred_fallthru
      _
    // Predicated region
    $region26: #{mlm_head_forward.1} parent=1 // pred_check
      _
    $region27: #{mlm_head_forward.1} parent=1 // pred_check_branch
      %48 = sbr.rel (0) target = $region29
    $region28: #{mlm_head_forward.1} parent=1 // pred_region
      _
    $region29: #{mlm_head_forward.1} parent=1 // pred_fallthru
      _
    // Predicated region
    $region30: #{mlm_head_forward.1} parent=1 // pred_check
      _
    $region31: #{mlm_head_forward.1} parent=1 // pred_check_branch
      %50 = sbr.rel (0) target = $region33
    $region32: #{mlm_head_forward.1} parent=1 // pred_region
      %51 = dma.done [#allocation4], 256
    $region33: #{mlm_head_forward.1} parent=1 // pred_fallthru
      _
    // Predicated region
    $region34: #{mlm_head_forward.1} parent=1 // pred_check
      _
    $region35: #{mlm_head_forward.1} parent=1 // pred_check_branch
      %53 = sbr.rel (0) target = $region37
    $region36: #{mlm_head_forward.1} parent=1 // pred_region
      %54 = dma.done [#allocation7], 512
    $region37: #{mlm_head_forward.1} parent=1 // pred_fallthru
      _
    %p56 = scmp.eq.s32.totalorder 0, 0
    // Predicated region
    $region38: #{mlm_head_forward.1} parent=1 // pred_check
      %p57 = pneg %p56
    $region39: #{mlm_head_forward.1} parent=1 // pred_check_branch
      %59 = sbr.rel (%p57) target = $region41
    $region40: #{mlm_head_forward.1} parent=1 // pred_region
      %v60 = vld [vmem:[#allocation3] sm:$0xff]
      %v61 = vld [vmem:[#allocation3 + $0x8] sm:$0xff]
      %v62 = vpack.c.bf16 %v61, %v60
      %v63 = vld [vmem:[%s1] sm:$0xf]
      %v64 = vld [vmem:[%s1 + $0x4] sm:$0xf]
      %v65 = vld [vmem:[%s1 + $0x8] sm:$0xf]
      %v66 = vld [vmem:[%s1 + $0xc] sm:$0xf]
      %v67 = vld [vmem:[%s2] sm:$0x1]
      %v69 = vlaneseq
      %v70 = vshrl.u32 %v69, 7
      %v71 = vsub.s32 0, %v70
      %v72 = vrot.slane %v67, %v71
      %v78 = vunpack.c.l.b16 %v63
      %v79 = vunpack.c.l.b16 %v64
      %v80 = vunpack.c.l.b16 %v65
      %v81 = vunpack.c.l.b16 %v66
      %v82 = vpack.c.b16 %v79, %v78
      %v83 = vpack.c.b16 %v81, %v80
      %vm86 = vcmask 261120
      %v88 = vsel %vm86, %v62, 0
      %90 = vmatprep.subr.bf16.mxu0 0
      %91 = vmatpush1.bf16.msra.mxu0 %v82
      %92 = vmatprep.subr.bf16.mxu0 0
      %93 = vmatpush1.bf16.msra.mxu0 %v83
      %94 = vmatprep.subr.bf16.mxu0 0
      %95 = vmatpush1.bf16.msra.mxu0 0
      %96 = vmatprep.subr.bf16.mxu0 0
      %97 = vmatpush1.bf16.msra.mxu0 0
      %98 = vmatprep.subr.bf16.mxu0 0
      %99 = vmatpush1.bf16.msra.mxu0 0
      %100 = vmatprep.subr.bf16.mxu0 0
      %101 = vmatpush1.bf16.msra.mxu0 0
      %102 = vmatprep.subr.bf16.mxu0 0
      %103 = vmatpush1.bf16.msra.mxu0 0
      %104 = vmatprep.subr.bf16.mxu0 0
      %105 = vmatpush1.bf16.msra.mxu0 0
      %106 = vmatprep.subr.bf16.mxu0 0
      %107 = vmatpush1.bf16.msra.mxu0 0
      %108 = vmatprep.subr.bf16.mxu0 0
      %109 = vmatpush1.bf16.msra.mxu0 0
      %110 = vmatprep.subr.bf16.mxu0 0
      %111 = vmatpush1.bf16.msra.mxu0 0
      %112 = vmatprep.subr.bf16.mxu0 0
      %113 = vmatpush1.bf16.msra.mxu0 0
      %114 = vmatprep.subr.bf16.mxu0 0
      %115 = vmatpush1.bf16.msra.mxu0 0
      %116 = vmatprep.subr.bf16.mxu0 0
      %117 = vmatpush1.bf16.msra.mxu0 0
      %118 = vmatprep.subr.bf16.mxu0 0
      %119 = vmatpush1.bf16.msra.mxu0 0
      %120 = vmatprep.subr.bf16.mxu0 0
      %121 = vmatpush1.bf16.msra.mxu0 0
      %122 = vmatprep.mubr.bf16.mxu0 0
      %123 = vmatmul.mubr.bf16.gmra.mrb[0].mxu0 %v88
      %v124 = vpop.f32.mrb[0].mxu0
      %v125 = vadd.f32 %v72, %v124
      %v126 = vpop.f32.mrb[0].mxu0
      %v127 = vpop.f32.mrb[0].mxu0
      %v128 = vadd.f32 %v72, %v127
      %v129 = vpop.f32.mrb[0].mxu0
      %130 = vdwg.mxu0
      %v131 = vsel %vm86, %v125, 0.0
      %132 = vadd.xlane.f32.xlu0 %v131
      %v133 = vpop.xlane.xlu0 %132
      %v134 = vsel %vm86, %v128, 0.0
      %135 = vadd.xlane.f32.xlu0 %v134
      %v136 = vpop.xlane.xlu0 %135
      %v137 = vrcp.pop 32.0
      %v138 = vmul.f32 %v133, %v137
      %v139 = vmul.f32 %v136, %v137
      %v140 = vsub.f32 %v125, %v138
      %v141 = vsub.f32 %v128, %v139
      %v142 = vmul.f32 %v140, %v140
      %v143 = vmul.f32 %v141, %v141
      %v144 = vsel %vm86, %v142, 0.0
      %145 = vadd.xlane.f32.xlu0 %v144
      %v146 = vpop.xlane.xlu0 %145
      %v147 = vsel %vm86, %v143, 0.0
      %148 = vadd.xlane.f32.xlu0 %v147
      %v149 = vpop.xlane.xlu0 %148
      %v150 = vmul.f32 %v146, %v137
      %v151 = vmul.f32 %v149, %v137
      %v152 = vadd.f32 %v150, 1e-05
      %v153 = vadd.f32 %v151, 1e-05
      %v154 = vrsqrt.pop %v152
      %v155 = vrsqrt.pop %v153
      %v156 = vmul.f32 %v140, %v154
      %v157 = vmul.f32 %v141, %v155
      %v158 = vld [vmem:[%s3] sm:$0x1]
      %v160 = vlaneseq
      %v161 = vshrl.u32 %v160, 7
      %v162 = vsub.s32 0, %v161
      %v163 = vrot.slane %v158, %v162
      %v165 = vmul.f32 %v156, %v163
      %v166 = vmul.f32 %v157, %v163
      %v167 = vld [vmem:[%s4] sm:$0x1]
      %v169 = vlaneseq
      %v170 = vshrl.u32 %v169, 7
      %v171 = vsub.s32 0, %v170
      %v172 = vrot.slane %v167, %v171
      %v174 = vadd.f32 %v165, %v172
      %v175 = vadd.f32 %v166, %v172
      %v176 = vmax.f32 %v174, 0.0
      %v177 = vmax.f32 %v175, 0.0
      %v178 = vpack.c.bf16 %v177, %v176
      %179 = vst.msk [vmem:[#allocation2] sm:$0xff] %vm86, %v178
    $region41: #{mlm_head_forward.1} parent=1 // pred_fallthru
      _
    %v180 = vld [vmem:[#allocation2] sm:$0xff]
    %v181 = vld [vmem:[#allocation6] sm:$0xff]
    %v182 = vld [vmem:[#allocation6 + $0x8] sm:$0xff]
    %v183 = vld [vmem:[#allocation6 + $0x10] sm:$0xff]
    %v184 = vld [vmem:[#allocation6 + $0x18] sm:$0xff]
    %v185 = vld [vmem:[%s6] sm:$0x3]
    %v187 = vlaneseq
    %v188 = vshrl.u32 %v187, 7
    %v189 = vsub.s32 0, %v188
    %v190 = vrot.slane %v185, %v189
    %v191 = vlaneseq
    %v192 = vshrl.u32 %v191, 7
    %v193 = vsub.s32 1, %v192
    %v194 = vrot.slane %v185, %v193
    %v201 = vunpack.c.l.b16 %v181
    %v202 = vunpack.c.h.b16 %v181
    %v203 = vunpack.c.l.b16 %v182
    %v204 = vunpack.c.h.b16 %v182
    %v205 = vunpack.c.l.b16 %v183
    %v206 = vunpack.c.h.b16 %v183
    %v207 = vunpack.c.l.b16 %v184
    %v208 = vunpack.c.h.b16 %v184
    %v209 = vpack.c.b16 %v203, %v201
    %v210 = vpack.c.b16 %v204, %v202
    %v211 = vpack.c.b16 %v207, %v205
    %v212 = vpack.c.b16 %v208, %v206
    %vm217 = vcmask 261120
    %v219 = vsel %vm217, %v180, 0
    %221 = vmatprep.subr.bf16.mxu0 %v210
    %222 = vmatpush1.bf16.msra.mxu0 %v209
    %223 = vmatprep.subr.bf16.mxu0 %v212
    %224 = vmatpush1.bf16.msra.mxu0 %v211
    %225 = vmatprep.subr.bf16.mxu0 0
    %226 = vmatpush1.bf16.msra.mxu0 0
    %227 = vmatprep.subr.bf16.mxu0 0
    %228 = vmatpush1.bf16.msra.mxu0 0
    %229 = vmatprep.subr.bf16.mxu0 0
    %230 = vmatpush1.bf16.msra.mxu0 0
    %231 = vmatprep.subr.bf16.mxu0 0
    %232 = vmatpush1.bf16.msra.mxu0 0
    %233 = vmatprep.subr.bf16.mxu0 0
    %234 = vmatpush1.bf16.msra.mxu0 0
    %235 = vmatprep.subr.bf16.mxu0 0
    %236 = vmatpush1.bf16.msra.mxu0 0
    %237 = vmatprep.subr.bf16.mxu0 0
    %238 = vmatpush1.bf16.msra.mxu0 0
    %239 = vmatprep.subr.bf16.mxu0 0
    %240 = vmatpush1.bf16.msra.mxu0 0
    %241 = vmatprep.subr.bf16.mxu0 0
    %242 = vmatpush1.bf16.msra.mxu0 0
    %243 = vmatprep.subr.bf16.mxu0 0
    %244 = vmatpush1.bf16.msra.mxu0 0
    %245 = vmatprep.subr.bf16.mxu0 0
    %246 = vmatpush1.bf16.msra.mxu0 0
    %247 = vmatprep.subr.bf16.mxu0 0
    %248 = vmatpush1.bf16.msra.mxu0 0
    %249 = vmatprep.subr.bf16.mxu0 0
    %250 = vmatpush1.bf16.msra.mxu0 0
    %251 = vmatprep.subr.bf16.mxu0 0
    %252 = vmatpush1.bf16.msra.mxu0 0
    %253 = vmatprep.mubr.bf16.mxu0 0
    %254 = vmatmul.mubr.bf16.gmra.mrb[0].mxu0 %v219
    %v255 = vpop.f32.mrb[0].mxu0
    %v256 = vadd.f32 %v190, %v255
    %v257 = vpop.f32.mrb[0].mxu0
    %v258 = vadd.f32 %v194, %v257
    %v259 = vpop.f32.mrb[0].mxu0
    %v260 = vadd.f32 %v190, %v259
    %v261 = vpop.f32.mrb[0].mxu0
    %v262 = vadd.f32 %v194, %v261
    %263 = vdwg.mxu0
    %v264 = vpack.c.bf16 %v260, %v256
    %v265 = vpack.c.bf16 %v262, %v258
    %v268 = vunpack.c.l.b16 %v264
    %v269 = vunpack.c.l.b16 %v265
    %v270 = vunpack.c.h.b16 %v264
    %v271 = vunpack.c.h.b16 %v265
    %v272 = vpack.c.b16 %v269, %v268
    %v273 = vpack.c.b16 %v271, %v270
    %276 = vst [vmem:[#allocation8] sm:$0xff] %v272
    %277 = vst [vmem:[#allocation8 + $0x8] sm:$0xff] %v273
    // Predicated region
    $region42: #{mlm_head_forward.1} parent=1 // pred_check
      _
    $region43: #{mlm_head_forward.1} parent=1 // pred_check_branch
      %279 = sbr.rel (0) target = $region45
    $region44: #{mlm_head_forward.1} parent=1 // pred_region
      %s281 = ssub.s32 256, 256
      %282 = vsyncadd [#allocation5], %s281
      %s283 = sshll.u32 [#allocation8], 4
      %s284 = int_to_ptr.vmem [resolvable:$true] %s283
      %289 = dma.vmem_to_hbm [thread:$0]  %s284, 256, %s7, [#allocation5], 128, 128, 8
    $region45: #{mlm_head_forward.1} parent=1 // pred_fallthru
      _
    // Predicated region
    $region46: #{mlm_head_forward.1} parent=1 // pred_check
      _
    $region47: #{mlm_head_forward.1} parent=1 // pred_check_branch
      %291 = sbr.rel (0) target = $region49
    $region48: #{mlm_head_forward.1} parent=1 // pred_region
      %292 = dma.done [#allocation5], 256
    $region49: #{mlm_head_forward.1} parent=1 // pred_fallthru
      _
    %293 = vsyncpa [#allocation4], 1
    %294 = vsyncpa [#allocation7], 1
    %295 = vsyncpa [#allocation5], 1

</llo_original>
